<compile_context>
chip_gen: v7x
topology: tpu7x:2x2x1
jax: 0.10.0
libtpu: 0.0.40
codegen_flags: <defaults>
</compile_context>

<pallas_src>
import jax
import jax.numpy as jnp
from jax import lax
from jax.experimental import pallas as pl
from jax.experimental.pallas import tpu as pltpu

# ----------------------------- model dims -----------------------------------
B = 2            # batch
L = 16           # sequence length (multiple of 8 -> tile-aligned reshapes)
C_IN = 8         # input channels (feature dim of x before permute)
HIDDEN = 32      # conv output channels
NUM_CLASSES = 10 # final linear output
KSIZE = 3        # conv kernel size (padding=1 -> 'same')


# ------------------------------ Pallas kernel --------------------------------
def _single_cnn_kernel(x_ref, wc_ref, bc_ref, wf_ref, bf_ref, o_ref):
    """Whole batch in one ungridded invocation.

    x_ref  : (B, L, C_IN)             raw input, channels-last
    wc_ref : (KSIZE, C_IN, HIDDEN)    conv1d weight, tap-major
    bc_ref : (1, HIDDEN)
    wf_ref : (HIDDEN, NUM_CLASSES)    pre-scaled by 1/L (pool fold)
    bf_ref : (1, NUM_CLASSES)
    o_ref  : (B, NUM_CLASSES)
    """
    # (B, L, C) -> (B*L, C); L is a multiple of 8 so this reshape is tile-aligned.
    x2d = x_ref[...].reshape(B * L, C_IN)

    # Per-row boundary masks (conv padding=1): first / last position of each
    # batch row-group sees zeros from the neighbouring tap.
    row = lax.broadcasted_iota(jnp.int32, (B * L, 1), 0)
    is_first = (row % L) == 0
    is_last = (row % L) == (L - 1)

    # Shifted taps via XLU sublane rotation + VPU mask (no concat relayouts).
    # roll(+1): row r holds x[r-1]; roll(B*L-1) == roll(-1): row r holds x[r+1].
    # Wrapped rows coincide exactly with the masked boundary rows.
    x_prev = jnp.where(is_first, 0.0, pltpu.roll(x2d, shift=1, axis=0))
    x_next = jnp.where(is_last, 0.0, pltpu.roll(x2d, shift=B * L - 1, axis=0))

    # Conv1d(k=3, pad=1) as 3 accumulated MXU matmuls, then bias + ReLU.
    h = jnp.dot(x_prev, wc_ref[0], preferred_element_type=jnp.float32)
    h = h + jnp.dot(x2d, wc_ref[1], preferred_element_type=jnp.float32)
    h = h + jnp.dot(x_next, wc_ref[2], preferred_element_type=jnp.float32)
    h = jnp.maximum(h + bc_ref[...], 0.0)                   # (B*L, HIDDEN)

    # Global average pool: sum over L (the 1/L scale is folded into wf_ref).
    pooled = jnp.sum(h.reshape(B, L, HIDDEN), axis=1)        # (B, HIDDEN)

    # Final linear head -> (B, NUM_CLASSES), single-slab store.
    out = jnp.dot(pooled, wf_ref[...],
                  preferred_element_type=jnp.float32) + bf_ref[...]
    o_ref[...] = out.astype(o_ref.dtype)


@jax.jit
def single_cnn_forward(x, conv_w, conv_b, fc_w_scaled, fc_b):
    """x: (B, L, C_IN) float32  ->  (B, NUM_CLASSES) float32."""
    vmem_spec = pl.BlockSpec(memory_space=pltpu.MemorySpace.VMEM)
    return pl.pallas_call(
        _single_cnn_kernel,
        out_shape=jax.ShapeDtypeStruct((B, NUM_CLASSES), jnp.float32),
        in_specs=[vmem_spec] * 5,
        out_specs=vmem_spec,
    )(x, conv_w, conv_b, fc_w_scaled, fc_b)


# ------------------------- pure-JAX reference --------------------------------
def reference_forward(x, conv_w, conv_b, fc_w, fc_b):
    """conv_w: (KSIZE, C_IN, HIDDEN); fc_w here is the UN-scaled weight."""
    x_pad = jnp.pad(x, ((0, 0), (1, 1), (0, 0)))             # (B, L+2, C)
    acc = jnp.zeros((B, L, HIDDEN), jnp.float32)
    for k in range(KSIZE):
        acc = acc + jnp.einsum("blc,ch->blh", x_pad[:, k:k + L, :], conv_w[k])
    acc = jax.nn.relu(acc + conv_b[None, :, :])
    pooled = jnp.mean(acc, axis=1)                            # (B, HIDDEN)
    return pooled @ fc_w + fc_b


# ---------------------------------- main -------------------------------------
if __name__ == "__main__":
    key = jax.random.PRNGKey(0)
    kx, kw1, kb1, kw2, kb2 = jax.random.split(key, 5)

    # Input: (B, L, C) — the tensor the PyTorch model sees before permute(0,2,1).
    x = jax.random.normal(kx, (B, L, C_IN), dtype=jnp.float32)

    # Parameters (conv weight tap-major: (K, C_in, H)).
    conv_w = jax.random.normal(kw1, (KSIZE, C_IN, HIDDEN), jnp.float32) * 0.1
    conv_b = jax.random.normal(kb1, (1, HIDDEN), jnp.float32) * 0.1
    fc_w = jax.random.normal(kw2, (HIDDEN, NUM_CLASSES), jnp.float32) * 0.1
    fc_b = jax.random.normal(kb2, (1, NUM_CLASSES), jnp.float32) * 0.1

    # One-time prep outside the jitted forward: fold the 1/L pool scale into
    # the FC weight (sum(h)/L @ W == sum(h) @ (W/L)).
    fc_w_scaled = fc_w * (1.0 / L)

    out = single_cnn_forward(x, conv_w, conv_b, fc_w_scaled, fc_b)
    out = jax.block_until_ready(out)

    ref = reference_forward(x, conv_w, conv_b, fc_w, fc_b)
    assert out.shape == (B, NUM_CLASSES)
    assert jnp.allclose(out, ref, atol=1e-4, rtol=1e-4), "mismatch vs reference"

    print("KERNEL_OK")
</pallas_src>

<mosaic_0001>
module attributes {stable_mosaic.version = 11 : i64} {
  func.func @_single_cnn_kernel(%arg0: memref<2x16x8xf32, #tpu.memory_space<vmem>>, %arg1: memref<3x8x32xf32, #tpu.memory_space<vmem>>, %arg2: memref<1x32xf32, #tpu.memory_space<vmem>>, %arg3: memref<32x10xf32, #tpu.memory_space<vmem>>, %arg4: memref<1x10xf32, #tpu.memory_space<vmem>>, %arg5: memref<2x10xf32, #tpu.memory_space<vmem>>) attributes {dimension_semantics = [], scalar_prefetch = 0 : i64, scratch_operands = 0 : i64, tpu.core_type = #tpu.core_type<tc>} {
    %c0 = arith.constant 0 : index
    %c0_0 = arith.constant 0 : index
    %c0_1 = arith.constant 0 : index
    %0 = vector.load %arg0[%c0, %c0_0, %c0_1] : memref<2x16x8xf32, #tpu.memory_space<vmem>>, vector<2x16x8xf32>
    %1 = vector.shape_cast %0 : vector<2x16x8xf32> to vector<32x8xf32>
    %2 = tpu.iota {dimensions = array<i32: 0>} : vector<32x1xi32>
    %c16_i32 = arith.constant 16 : i32
    %c0_i32 = arith.constant 0 : i32
    %3 = arith.cmpi eq, %c16_i32, %c0_i32 : i32
    %c1_i32 = arith.constant 1 : i32
    %4 = arith.select %3, %c1_i32, %c16_i32 : i32
    %5 = vector.broadcast %4 : i32 to vector<32x1xi32>
    %6 = arith.remsi %2, %5 : vector<32x1xi32>
    %c0_i32_2 = arith.constant 0 : i32
    %7 = vector.broadcast %c0_i32_2 : i32 to vector<32x1xi32>
    %8 = arith.cmpi ne, %6, %7 : vector<32x1xi32>
    %c0_i32_3 = arith.constant 0 : i32
    %9 = vector.broadcast %c0_i32_3 : i32 to vector<32x1xi32>
    %10 = arith.cmpi slt, %6, %9 : vector<32x1xi32>
    %c0_i32_4 = arith.constant 0 : i32
    %11 = arith.cmpi slt, %4, %c0_i32_4 : i32
    %12 = vector.broadcast %11 : i1 to vector<32x1xi1>
    %13 = vector.broadcast %12 : vector<32x1xi1> to vector<32x1xi1>
    %14 = arith.xori %10, %13 : vector<32x1xi1>
    %15 = arith.andi %14, %8 : vector<32x1xi1>
    %16 = vector.broadcast %4 : i32 to vector<32x1xi32>
    %17 = arith.addi %6, %16 : vector<32x1xi32>
    %18 = arith.select %15, %17, %6 : vector<32x1xi1>, vector<32x1xi32>
    %c0_i32_5 = arith.constant 0 : i32
    %19 = vector.broadcast %c0_i32_5 : i32 to vector<32x1xi32>
    %20 = arith.cmpi eq, %18, %19 : vector<32x1xi32>
    %c16_i32_6 = arith.constant 16 : i32
    %c0_i32_7 = arith.constant 0 : i32
    %21 = arith.cmpi eq, %c16_i32_6, %c0_i32_7 : i32
    %c1_i32_8 = arith.constant 1 : i32
    %22 = arith.select %21, %c1_i32_8, %c16_i32_6 : i32
    %23 = vector.broadcast %22 : i32 to vector<32x1xi32>
    %24 = arith.remsi %2, %23 : vector<32x1xi32>
    %c0_i32_9 = arith.constant 0 : i32
    %25 = vector.broadcast %c0_i32_9 : i32 to vector<32x1xi32>
    %26 = arith.cmpi ne, %24, %25 : vector<32x1xi32>
    %c0_i32_10 = arith.constant 0 : i32
    %27 = vector.broadcast %c0_i32_10 : i32 to vector<32x1xi32>
    %28 = arith.cmpi slt, %24, %27 : vector<32x1xi32>
    %c0_i32_11 = arith.constant 0 : i32
    %29 = arith.cmpi slt, %22, %c0_i32_11 : i32
    %30 = vector.broadcast %29 : i1 to vector<32x1xi1>
    %31 = vector.broadcast %30 : vector<32x1xi1> to vector<32x1xi1>
    %32 = arith.xori %28, %31 : vector<32x1xi1>
    %33 = arith.andi %32, %26 : vector<32x1xi1>
    %34 = vector.broadcast %22 : i32 to vector<32x1xi32>
    %35 = arith.addi %24, %34 : vector<32x1xi32>
    %36 = arith.select %33, %35, %24 : vector<32x1xi1>, vector<32x1xi32>
    %c15_i32 = arith.constant 15 : i32
    %37 = vector.broadcast %c15_i32 : i32 to vector<32x1xi32>
    %38 = arith.cmpi eq, %36, %37 : vector<32x1xi32>
    %c1_i32_12 = arith.constant 1 : i32
    %39 = tpu.dynamic_rotate %1 by %c1_i32_12 dim 0 : vector<32x8xf32>, i32 -> vector<32x8xf32>
    %cst = arith.constant 0.000000e+00 : f32
    %40 = vector.shape_cast %20 : vector<32x1xi1> to vector<32x1xi1>
    %41 = vector.broadcast %40 : vector<32x1xi1> to vector<32x8xi1>
    %42 = vector.broadcast %cst : f32 to vector<32x8xf32>
    %43 = arith.select %41, %42, %39 : vector<32x8xi1>, vector<32x8xf32>
    %c31_i32 = arith.constant 31 : i32
    %44 = tpu.dynamic_rotate %1 by %c31_i32 dim 0 : vector<32x8xf32>, i32 -> vector<32x8xf32>
    %cst_13 = arith.constant 0.000000e+00 : f32
    %45 = vector.shape_cast %38 : vector<32x1xi1> to vector<32x1xi1>
    %46 = vector.broadcast %45 : vector<32x1xi1> to vector<32x8xi1>
    %47 = vector.broadcast %cst_13 : f32 to vector<32x8xf32>
    %48 = arith.select %46, %47, %44 : vector<32x8xi1>, vector<32x8xf32>
    %c0_14 = arith.constant 0 : index
    %c0_15 = arith.constant 0 : index
    %c0_16 = arith.constant 0 : index
    %49 = vector.load %arg1[%c0_14, %c0_15, %c0_16] : memref<3x8x32xf32, #tpu.memory_space<vmem>>, vector<1x8x32xf32>
    %50 = vector.shape_cast %49 : vector<1x8x32xf32> to vector<8x32xf32>
    %cst_17 = arith.constant dense<0.000000e+00> : vector<32x32xf32>
    %51 = tpu.matmul %43, %50, %cst_17 {dimension_numbers = #tpu.dot_dimension_numbers<[1], [0], [0], [1], [0, 0, 1, 1], [], []>} : vector<32x8xf32>, vector<8x32xf32>, vector<32x32xf32> -> vector<32x32xf32>
    %c1 = arith.constant 1 : index
    %c0_18 = arith.constant 0 : index
    %c0_19 = arith.constant 0 : index
    %52 = vector.load %arg1[%c1, %c0_18, %c0_19] : memref<3x8x32xf32, #tpu.memory_space<vmem>>, vector<1x8x32xf32>
    %53 = vector.shape_cast %52 : vector<1x8x32xf32> to vector<8x32xf32>
    %cst_20 = arith.constant dense<0.000000e+00> : vector<32x32xf32>
    %54 = tpu.matmul %1, %53, %cst_20 {dimension_numbers = #tpu.dot_dimension_numbers<[1], [0], [0], [1], [0, 0, 1, 1], [], []>} : vector<32x8xf32>, vector<8x32xf32>, vector<32x32xf32> -> vector<32x32xf32>
    %55 = arith.addf %51, %54 : vector<32x32xf32>
    %c2 = arith.constant 2 : index
    %c0_21 = arith.constant 0 : index
    %c0_22 = arith.constant 0 : index
    %56 = vector.load %arg1[%c2, %c0_21, %c0_22] : memref<3x8x32xf32, #tpu.memory_space<vmem>>, vector<1x8x32xf32>
    %57 = vector.shape_cast %56 : vector<1x8x32xf32> to vector<8x32xf32>
    %cst_23 = arith.constant dense<0.000000e+00> : vector<32x32xf32>
    %58 = tpu.matmul %48, %57, %cst_23 {dimension_numbers = #tpu.dot_dimension_numbers<[1], [0], [0], [1], [0, 0, 1, 1], [], []>} : vector<32x8xf32>, vector<8x32xf32>, vector<32x32xf32> -> vector<32x32xf32>
    %59 = arith.addf %55, %58 : vector<32x32xf32>
    %c0_24 = arith.constant 0 : index
    %c0_25 = arith.constant 0 : index
    %60 = vector.load %arg2[%c0_24, %c0_25] : memref<1x32xf32, #tpu.memory_space<vmem>>, vector<1x32xf32>
    %61 = vector.broadcast %60 : vector<1x32xf32> to vector<32x32xf32>
    %62 = arith.addf %59, %61 : vector<32x32xf32>
    %cst_26 = arith.constant 0.000000e+00 : f32
    %63 = vector.broadcast %cst_26 : f32 to vector<32x32xf32>
    %64 = arith.maximumf %62, %63 : vector<32x32xf32>
    %65 = vector.shape_cast %64 : vector<32x32xf32> to vector<2x16x32xf32>
    %cst_27 = arith.constant dense<0.000000e+00> : vector<2x32xf32>
    %66 = vector.multi_reduction <add>, %65, %cst_27 [1] : vector<2x16x32xf32> to vector<2x32xf32>
    %c0_28 = arith.constant 0 : index
    %c0_29 = arith.constant 0 : index
    %67 = vector.load %arg3[%c0_28, %c0_29] : memref<32x10xf32, #tpu.memory_space<vmem>>, vector<32x10xf32>
    %cst_30 = arith.constant dense<0.000000e+00> : vector<2x10xf32>
    %68 = tpu.matmul %66, %67, %cst_30 {dimension_numbers = #tpu.dot_dimension_numbers<[1], [0], [0], [1], [0, 0, 1, 1], [], []>} : vector<2x32xf32>, vector<32x10xf32>, vector<2x10xf32> -> vector<2x10xf32>
    %c0_31 = arith.constant 0 : index
    %c0_32 = arith.constant 0 : index
    %69 = vector.load %arg4[%c0_31, %c0_32] : memref<1x10xf32, #tpu.memory_space<vmem>>, vector<1x10xf32>
    %70 = vector.broadcast %69 : vector<1x10xf32> to vector<2x10xf32>
    %71 = arith.addf %68, %70 : vector<2x10xf32>
    %c0_33 = arith.constant 0 : index
    %c0_34 = arith.constant 0 : index
    %72 = vector.load %arg5[%c0_33, %c0_34] : memref<2x10xf32, #tpu.memory_space<vmem>>, vector<2x10xf32>
    tpu.vector_store %arg5[%c0_33, %c0_34], %71 {strides = array<i32>} : memref<2x10xf32, #tpu.memory_space<vmem>>, vector<2x10xf32>,
    return
  }
}

</mosaic_0001>

<llo_original>
// kernel: single_cnn_forward.1
$region0: #{single_cnn_forward.1}
  #allocation0 [shape = 'u32[]', space=smem, size = 0x4, offset = 0x4, fixed_abs, tag = 'smem constant byte address 0x4 - core index']
  #allocation1 [shape = 'u32[144,128]{1,0:T(1,128)}', space=vmem, size = 0x12000, scoped, tag = 'internal scratch']
  %s0 = inlined_call_operand.vmem [shape: f32[2,16,8], index: 0, kind: input, shape index: {}]
  %s1 = inlined_call_operand.vmem [shape: f32[3,8,32], index: 1, kind: input, shape index: {}]
  %s2 = inlined_call_operand.vmem [shape: f32[1,32], index: 2, kind: input, shape index: {}]
  %s3 = inlined_call_operand.vmem [shape: f32[32,10], index: 3, kind: input, shape index: {}]
  %s4 = inlined_call_operand.vmem [shape: f32[1,10], index: 4, kind: input, shape index: {}]
  %s5 = inlined_call_operand.hbm [shape: f32[2,10], index: 5, kind: output, shape index: {}]
  %s6 = sld [smem:[#allocation0]]
  $region30: #{single_cnn_forward.1} parent=0
    _
  %s8 = ssub.s32 1, %s6
  %s9 = scalar_select 0, %s8, %s6
  $region1: #{single_cnn_forward.1} parent=0
    #allocation2 [shape = 'u8[1024]{0}', space=vmem, size = 0x400, scoped, tag = 'output window, operand 0, single buffered']
    #allocation3 [shape = 's32[1]{0}', space=sflag, size = 0x4, scoped, tag = 'scoped memory for single_cnn_forward.1']
    %10 = vsyncpa [#allocation3], 0
    // Predicated region
    $region2: #{single_cnn_forward.1} parent=1 // pred_check
      _
    $region3: #{single_cnn_forward.1} parent=1 // pred_check_branch
      %12 = sbr.rel (0) target = $region5
    $region4: #{single_cnn_forward.1} parent=1 // pred_region
      _
    $region5: #{single_cnn_forward.1} parent=1 // pred_fallthru
      _
    // Predicated region
    $region6: #{single_cnn_forward.1} parent=1 // pred_check
      _
    $region7: #{single_cnn_forward.1} parent=1 // pred_check_branch
      %14 = sbr.rel (0) target = $region9
    $region8: #{single_cnn_forward.1} parent=1 // pred_region
      _
    $region9: #{single_cnn_forward.1} parent=1 // pred_fallthru
      _
    // Predicated region
    $region10: #{single_cnn_forward.1} parent=1 // pred_check
      _
    $region11: #{single_cnn_forward.1} parent=1 // pred_check_branch
      %16 = sbr.rel (0) target = $region13
    $region12: #{single_cnn_forward.1} parent=1 // pred_region
      _
    $region13: #{single_cnn_forward.1} parent=1 // pred_fallthru
      _
    // Predicated region
    $region14: #{single_cnn_forward.1} parent=1 // pred_check
      _
    $region15: #{single_cnn_forward.1} parent=1 // pred_check_branch
      %18 = sbr.rel (0) target = $region17
    $region16: #{single_cnn_forward.1} parent=1 // pred_region
      _
    $region17: #{single_cnn_forward.1} parent=1 // pred_fallthru
      _
    // Predicated region
    $region18: #{single_cnn_forward.1} parent=1 // pred_check
      _
    $region19: #{single_cnn_forward.1} parent=1 // pred_check_branch
      %20 = sbr.rel (0) target = $region21
    $region20: #{single_cnn_forward.1} parent=1 // pred_region
      _
    $region21: #{single_cnn_forward.1} parent=1 // pred_fallthru
      _
    %v21 = vld [vmem:[%s0] sm:$0xff]
    %v22 = vld [vmem:[%s0 + $0x8] sm:$0xff]
    %v23 = vld [vmem:[%s0 + $0x10] sm:$0xff]
    %v24 = vld [vmem:[%s0 + $0x18] sm:$0xff]
    %v25 = vlaneseq
    %v26 = vshrl.u32 %v25, 7
    %v27 = vadd.s32 %v26, 8
    %v28 = vadd.s32 %v26, 16
    %v29 = vadd.s32 %v26, 24
    %vm30 = vcmp.lt.s32.totalorder %v26, 0
    %v31 = vsub.s32 0, %v26
    %v32 = vsel %vm30, %v31, %v26
    %v33 = vshrl.u32 %v32, 4
    %v34 = vand.u32 %v32, 15
    %v35 = vsub.s32 0, %v34
    %v36 = vsel %vm30, %v35, %v34
    %vm37 = vcmp.lt.s32.totalorder %v27, 0
    %v38 = vsub.s32 0, %v27
    %v39 = vsel %vm37, %v38, %v27
    %v40 = vshrl.u32 %v39, 4
    %v41 = vand.u32 %v39, 15
    %v42 = vsub.s32 0, %v41
    %v43 = vsel %vm37, %v42, %v41
    %vm44 = vcmp.lt.s32.totalorder %v28, 0
    %v45 = vsub.s32 0, %v28
    %v46 = vsel %vm44, %v45, %v28
    %v47 = vshrl.u32 %v46, 4
    %v48 = vand.u32 %v46, 15
    %v49 = vsub.s32 0, %v48
    %v50 = vsel %vm44, %v49, %v48
    %vm51 = vcmp.lt.s32.totalorder %v29, 0
    %v52 = vsub.s32 0, %v29
    %v53 = vsel %vm51, %v52, %v29
    %v54 = vshrl.u32 %v53, 4
    %v55 = vand.u32 %v53, 15
    %v56 = vsub.s32 0, %v55
    %v57 = vsel %vm51, %v56, %v55
    %vm58 = vcmp.ne.s32.totalorder %v36, 0
    %vm59 = vcmp.ne.s32.totalorder %v43, 0
    %vm60 = vcmp.ne.s32.totalorder %v50, 0
    %vm61 = vcmp.ne.s32.totalorder %v57, 0
    %vm62 = vcmp.lt.s32.totalorder %v36, 0
    %vm63 = vcmp.lt.s32.totalorder %v43, 0
    %vm64 = vcmp.lt.s32.totalorder %v50, 0
    %vm65 = vcmp.lt.s32.totalorder %v57, 0
    %vm66 = vmand %vm62, %vm58
    %vm67 = vmand %vm63, %vm59
    %vm68 = vmand %vm64, %vm60
    %vm69 = vmand %vm65, %vm61
    %v70 = vadd.s32 %v36, 16
    %v71 = vadd.s32 %v43, 16
    %v72 = vadd.s32 %v50, 16
    %v73 = vadd.s32 %v57, 16
    %v74 = vsel %vm66, %v70, %v36
    %v75 = vsel %vm67, %v71, %v43
    %v76 = vsel %vm68, %v72, %v50
    %v77 = vsel %vm69, %v73, %v57
    %vm78 = vcmp.eq.s32.totalorder %v74, 0
    %vm79 = vcmp.eq.s32.totalorder %v75, 0
    %vm80 = vcmp.eq.s32.totalorder %v76, 0
    %vm81 = vcmp.eq.s32.totalorder %v77, 0
    %vm82 = vcmp.eq.s32.totalorder %v74, 15
    %vm83 = vcmp.eq.s32.totalorder %v75, 15
    %vm84 = vcmp.eq.s32.totalorder %v76, 15
    %vm85 = vcmp.eq.s32.totalorder %v77, 15
    %v86 = vrot.slane %v21, 7
    %v87 = vrot.slane %v22, 7
    %v88 = vrot.slane %v23, 7
    %v89 = vrot.slane %v24, 7
    %vm90 = vcmp.lt.s32.totalorder %v26, 1
    %v91 = vsel %vm90, %v88, %v89
    %v92 = vsel %vm90, %v87, %v88
    %v93 = vsel %vm90, %v86, %v87
    %v94 = vsel %vm90, %v89, %v86
    %v95 = vsel %vm78, 1, 0
    %v96 = vsel %vm79, 1, 0
    %v97 = vsel %vm80, 1, 0
    %v98 = vsel %vm81, 1, 0
    %vm99 = vcmp.eq.s32.totalorder %v95, 1
    %vm100 = vcmp.eq.s32.totalorder %v96, 1
    %vm101 = vcmp.eq.s32.totalorder %v97, 1
    %vm102 = vcmp.eq.s32.totalorder %v98, 1
    %v103 = vsel %vm99, 0.0, %v94
    %v104 = vsel %vm100, 0.0, %v93
    %v105 = vsel %vm101, 0.0, %v92
    %v106 = vsel %vm102, 0.0, %v91
    %v107 = vrot.slane %v21, 1
    %v108 = vrot.slane %v22, 1
    %v109 = vrot.slane %v23, 1
    %v110 = vrot.slane %v24, 1
    %vm111 = vcmp.lt.s32.totalorder %v26, 7
    %v112 = vsel %vm111, %v109, %v110
    %v113 = vsel %vm111, %v108, %v109
    %v114 = vsel %vm111, %v107, %v108
    %v115 = vsel %vm111, %v110, %v107
    %v116 = vsel %vm82, 1, 0
    %v117 = vsel %vm83, 1, 0
    %v118 = vsel %vm84, 1, 0
    %v119 = vsel %vm85, 1, 0
    %vm120 = vcmp.eq.s32.totalorder %v116, 1
    %vm121 = vcmp.eq.s32.totalorder %v117, 1
    %vm122 = vcmp.eq.s32.totalorder %v118, 1
    %vm123 = vcmp.eq.s32.totalorder %v119, 1
    %v124 = vsel %vm120, 0.0, %v114
    %v125 = vsel %vm121, 0.0, %v113
    %v126 = vsel %vm122, 0.0, %v112
    %v127 = vsel %vm123, 0.0, %v115
    %v128 = vld [vmem:[%s1] sm:$0xff]
    %s129 = scalar_lea.vmem %s1, 8
    %v130 = vld [vmem:[%s129] sm:$0xff]
    %vm131 = vcmask 64512
    %v133 = vsel %vm131, %v21, 0
    %v136 = vsel %vm131, %v22, 0
    %v139 = vsel %vm131, %v23, 0
    %v142 = vsel %vm131, %v24, 0
    %144 = vmatprep.subr.mxu0 0.0
    %145 = vmatpush1.msra.mxu0 %v130
    %146 = vmatprep.subr.mxu0 0.0
    %147 = vmatpush1.msra.mxu0 0.0
    %148 = vmatprep.subr.mxu0 0.0
    %149 = vmatpush1.msra.mxu0 0.0
    %150 = vmatprep.subr.mxu0 0.0
    %151 = vmatpush1.msra.mxu0 0.0
    %152 = vmatprep.subr.mxu0 0.0
    %153 = vmatpush1.msra.mxu0 0.0
    %154 = vmatprep.subr.mxu0 0.0
    %155 = vmatpush1.msra.mxu0 0.0
    %156 = vmatprep.subr.mxu0 0.0
    %157 = vmatpush1.msra.mxu0 0.0
    %158 = vmatprep.subr.mxu0 0.0
    %159 = vmatpush1.msra.mxu0 0.0
    %160 = vmatprep.subr.mxu0 0.0
    %161 = vmatpush1.msra.mxu0 0.0
    %162 = vmatprep.subr.mxu0 0.0
    %163 = vmatpush1.msra.mxu0 0.0
    %164 = vmatprep.subr.mxu0 0.0
    %165 = vmatpush1.msra.mxu0 0.0
    %166 = vmatprep.subr.mxu0 0.0
    %167 = vmatpush1.msra.mxu0 0.0
    %168 = vmatprep.subr.mxu0 0.0
    %169 = vmatpush1.msra.mxu0 0.0
    %170 = vmatprep.subr.mxu0 0.0
    %171 = vmatpush1.msra.mxu0 0.0
    %172 = vmatprep.subr.mxu0 0.0
    %173 = vmatpush1.msra.mxu0 0.0
    %174 = vmatprep.subr.mxu0 0.0
    %175 = vmatpush1.msra.mxu0 0.0
    %176 = vmatprep.subr.mxu0 0.0
    %177 = vmatpush1.msra.mxu0 0.0
    %178 = vmatprep.subr.mxu0 0.0
    %179 = vmatpush1.msra.mxu0 0.0
    %180 = vmatprep.subr.mxu0 0.0
    %181 = vmatpush1.msra.mxu0 0.0
    %182 = vmatprep.subr.mxu0 0.0
    %183 = vmatpush1.msra.mxu0 0.0
    %184 = vmatprep.subr.mxu0 0.0
    %185 = vmatpush1.msra.mxu0 0.0
    %186 = vmatprep.subr.mxu0 0.0
    %187 = vmatpush1.msra.mxu0 0.0
    %188 = vmatprep.subr.mxu0 0.0
    %189 = vmatpush1.msra.mxu0 0.0
    %190 = vmatprep.subr.mxu0 0.0
    %191 = vmatpush1.msra.mxu0 0.0
    %192 = vmatprep.subr.mxu0 0.0
    %193 = vmatpush1.msra.mxu0 0.0
    %194 = vmatprep.subr.mxu0 0.0
    %195 = vmatpush1.msra.mxu0 0.0
    %196 = vmatprep.subr.mxu0 0.0
    %197 = vmatpush1.msra.mxu0 0.0
    %198 = vmatprep.subr.mxu0 0.0
    %199 = vmatpush1.msra.mxu0 0.0
    %200 = vmatprep.subr.mxu0 0.0
    %201 = vmatpush1.msra.mxu0 0.0
    %202 = vmatprep.subr.mxu0 0.0
    %203 = vmatpush1.msra.mxu0 0.0
    %204 = vmatprep.subr.mxu0 0.0
    %205 = vmatpush1.msra.mxu0 0.0
    %206 = vmatprep.subr.mxu0 0.0
    %207 = vmatpush1.msra.mxu0 0.0
    %208 = vmatprep.mubr.f32.mxu0 0.0
    %209 = vmatmul.mubr.f32.gmra.mrb[0].mxu0 %v133
    %v210 = vpop.f32.mrb[0].mxu0
    %v211 = vadd.f32 0.0, %v210
    %v212 = vpop.f32.mrb[0].mxu0
    %213 = vmatprep.mubr.f32.mxu0 0.0
    %214 = vmatmul.mubr.f32.gmra.mrb[0].mxu0 %v136
    %v215 = vpop.f32.mrb[0].mxu0
    %v216 = vadd.f32 0.0, %v215
    %v217 = vpop.f32.mrb[0].mxu0
    %218 = vmatprep.mubr.f32.mxu0 0.0
    %219 = vmatmul.mubr.f32.gmra.mrb[0].mxu0 %v139
    %v220 = vpop.f32.mrb[0].mxu0
    %v221 = vadd.f32 0.0, %v220
    %v222 = vpop.f32.mrb[0].mxu0
    %223 = vmatprep.mubr.f32.mxu0 0.0
    %224 = vmatmul.mubr.f32.gmra.mrb[0].mxu0 %v142
    %v225 = vpop.f32.mrb[0].mxu0
    %v226 = vadd.f32 0.0, %v225
    %v227 = vpop.f32.mrb[0].mxu0
    %228 = vdwg.mxu0
    %v230 = vsel %vm131, %v103, 0
    %v233 = vsel %vm131, %v104, 0
    %v236 = vsel %vm131, %v105, 0
    %v239 = vsel %vm131, %v106, 0
    %241 = vmatprep.subr.mxu0 0.0
    %242 = vmatpush1.msra.mxu0 %v128
    %243 = vmatprep.subr.mxu0 0.0
    %244 = vmatpush1.msra.mxu0 0.0
    %245 = vmatprep.subr.mxu0 0.0
    %246 = vmatpush1.msra.mxu0 0.0
    %247 = vmatprep.subr.mxu0 0.0
    %248 = vmatpush1.msra.mxu0 0.0
    %249 = vmatprep.subr.mxu0 0.0
    %250 = vmatpush1.msra.mxu0 0.0
    %251 = vmatprep.subr.mxu0 0.0
    %252 = vmatpush1.msra.mxu0 0.0
    %253 = vmatprep.subr.mxu0 0.0
    %254 = vmatpush1.msra.mxu0 0.0
    %255 = vmatprep.subr.mxu0 0.0
    %256 = vmatpush1.msra.mxu0 0.0
    %257 = vmatprep.subr.mxu0 0.0
    %258 = vmatpush1.msra.mxu0 0.0
    %259 = vmatprep.subr.mxu0 0.0
    %260 = vmatpush1.msra.mxu0 0.0
    %261 = vmatprep.subr.mxu0 0.0
    %262 = vmatpush1.msra.mxu0 0.0
    %263 = vmatprep.subr.mxu0 0.0
    %264 = vmatpush1.msra.mxu0 0.0
    %265 = vmatprep.subr.mxu0 0.0
    %266 = vmatpush1.msra.mxu0 0.0
    %267 = vmatprep.subr.mxu0 0.0
    %268 = vmatpush1.msra.mxu0 0.0
    %269 = vmatprep.subr.mxu0 0.0
    %270 = vmatpush1.msra.mxu0 0.0
    %271 = vmatprep.subr.mxu0 0.0
    %272 = vmatpush1.msra.mxu0 0.0
    %273 = vmatprep.subr.mxu0 0.0
    %274 = vmatpush1.msra.mxu0 0.0
    %275 = vmatprep.subr.mxu0 0.0
    %276 = vmatpush1.msra.mxu0 0.0
    %277 = vmatprep.subr.mxu0 0.0
    %278 = vmatpush1.msra.mxu0 0.0
    %279 = vmatprep.subr.mxu0 0.0
    %280 = vmatpush1.msra.mxu0 0.0
    %281 = vmatprep.subr.mxu0 0.0
    %282 = vmatpush1.msra.mxu0 0.0
    %283 = vmatprep.subr.mxu0 0.0
    %284 = vmatpush1.msra.mxu0 0.0
    %285 = vmatprep.subr.mxu0 0.0
    %286 = vmatpush1.msra.mxu0 0.0
    %287 = vmatprep.subr.mxu0 0.0
    %288 = vmatpush1.msra.mxu0 0.0
    %289 = vmatprep.subr.mxu0 0.0
    %290 = vmatpush1.msra.mxu0 0.0
    %291 = vmatprep.subr.mxu0 0.0
    %292 = vmatpush1.msra.mxu0 0.0
    %293 = vmatprep.subr.mxu0 0.0
    %294 = vmatpush1.msra.mxu0 0.0
    %295 = vmatprep.subr.mxu0 0.0
    %296 = vmatpush1.msra.mxu0 0.0
    %297 = vmatprep.subr.mxu0 0.0
    %298 = vmatpush1.msra.mxu0 0.0
    %299 = vmatprep.subr.mxu0 0.0
    %300 = vmatpush1.msra.mxu0 0.0
    %301 = vmatprep.subr.mxu0 0.0
    %302 = vmatpush1.msra.mxu0 0.0
    %303 = vmatprep.subr.mxu0 0.0
    %304 = vmatpush1.msra.mxu0 0.0
    %305 = vmatprep.mubr.f32.mxu0 0.0
    %306 = vmatmul.mubr.f32.gmra.mrb[0].mxu0 %v230
    %v307 = vpop.f32.mrb[0].mxu0
    %v308 = vadd.f32 %v211, %v307
    %v309 = vpop.f32.mrb[0].mxu0
    %310 = vmatprep.mubr.f32.mxu0 0.0
    %311 = vmatmul.mubr.f32.gmra.mrb[0].mxu0 %v233
    %v312 = vpop.f32.mrb[0].mxu0
    %v313 = vadd.f32 %v216, %v312
    %v314 = vpop.f32.mrb[0].mxu0
    %315 = vmatprep.mubr.f32.mxu0 0.0
    %316 = vmatmul.mubr.f32.gmra.mrb[0].mxu0 %v236
    %v317 = vpop.f32.mrb[0].mxu0
    %v318 = vadd.f32 %v221, %v317
    %v319 = vpop.f32.mrb[0].mxu0
    %320 = vmatprep.mubr.f32.mxu0 0.0
    %321 = vmatmul.mubr.f32.gmra.mrb[0].mxu0 %v239
    %v322 = vpop.f32.mrb[0].mxu0
    %v323 = vadd.f32 %v226, %v322
    %v324 = vpop.f32.mrb[0].mxu0
    %325 = vdwg.mxu0
    %s326 = scalar_lea.vmem %s1, 16
    %v327 = vld [vmem:[%s326] sm:$0xff]
    %v329 = vsel %vm131, %v124, 0
    %v332 = vsel %vm131, %v125, 0
    %v335 = vsel %vm131, %v126, 0
    %v338 = vsel %vm131, %v127, 0
    %340 = vmatprep.subr.mxu0 0.0
    %341 = vmatpush1.msra.mxu0 %v327
    %342 = vmatprep.subr.mxu0 0.0
    %343 = vmatpush1.msra.mxu0 0.0
    %344 = vmatprep.subr.mxu0 0.0
    %345 = vmatpush1.msra.mxu0 0.0
    %346 = vmatprep.subr.mxu0 0.0
    %347 = vmatpush1.msra.mxu0 0.0
    %348 = vmatprep.subr.mxu0 0.0
    %349 = vmatpush1.msra.mxu0 0.0
    %350 = vmatprep.subr.mxu0 0.0
    %351 = vmatpush1.msra.mxu0 0.0
    %352 = vmatprep.subr.mxu0 0.0
    %353 = vmatpush1.msra.mxu0 0.0
    %354 = vmatprep.subr.mxu0 0.0
    %355 = vmatpush1.msra.mxu0 0.0
    %356 = vmatprep.subr.mxu0 0.0
    %357 = vmatpush1.msra.mxu0 0.0
    %358 = vmatprep.subr.mxu0 0.0
    %359 = vmatpush1.msra.mxu0 0.0
    %360 = vmatprep.subr.mxu0 0.0
    %361 = vmatpush1.msra.mxu0 0.0
    %362 = vmatprep.subr.mxu0 0.0
    %363 = vmatpush1.msra.mxu0 0.0
    %364 = vmatprep.subr.mxu0 0.0
    %365 = vmatpush1.msra.mxu0 0.0
    %366 = vmatprep.subr.mxu0 0.0
    %367 = vmatpush1.msra.mxu0 0.0
    %368 = vmatprep.subr.mxu0 0.0
    %369 = vmatpush1.msra.mxu0 0.0
    %370 = vmatprep.subr.mxu0 0.0
    %371 = vmatpush1.msra.mxu0 0.0
    %372 = vmatprep.subr.mxu0 0.0
    %373 = vmatpush1.msra.mxu0 0.0
    %374 = vmatprep.subr.mxu0 0.0
    %375 = vmatpush1.msra.mxu0 0.0
    %376 = vmatprep.subr.mxu0 0.0
    %377 = vmatpush1.msra.mxu0 0.0
    %378 = vmatprep.subr.mxu0 0.0
    %379 = vmatpush1.msra.mxu0 0.0
    %380 = vmatprep.subr.mxu0 0.0
    %381 = vmatpush1.msra.mxu0 0.0
    %382 = vmatprep.subr.mxu0 0.0
    %383 = vmatpush1.msra.mxu0 0.0
    %384 = vmatprep.subr.mxu0 0.0
    %385 = vmatpush1.msra.mxu0 0.0
    %386 = vmatprep.subr.mxu0 0.0
    %387 = vmatpush1.msra.mxu0 0.0
    %388 = vmatprep.subr.mxu0 0.0
    %389 = vmatpush1.msra.mxu0 0.0
    %390 = vmatprep.subr.mxu0 0.0
    %391 = vmatpush1.msra.mxu0 0.0
    %392 = vmatprep.subr.mxu0 0.0
    %393 = vmatpush1.msra.mxu0 0.0
    %394 = vmatprep.subr.mxu0 0.0
    %395 = vmatpush1.msra.mxu0 0.0
    %396 = vmatprep.subr.mxu0 0.0
    %397 = vmatpush1.msra.mxu0 0.0
    %398 = vmatprep.subr.mxu0 0.0
    %399 = vmatpush1.msra.mxu0 0.0
    %400 = vmatprep.subr.mxu0 0.0
    %401 = vmatpush1.msra.mxu0 0.0
    %402 = vmatprep.subr.mxu0 0.0
    %403 = vmatpush1.msra.mxu0 0.0
    %404 = vmatprep.mubr.f32.mxu0 0.0
    %405 = vmatmul.mubr.f32.gmra.mrb[0].mxu0 %v329
    %v406 = vpop.f32.mrb[0].mxu0
    %v407 = vadd.f32 0.0, %v406
    %v408 = vpop.f32.mrb[0].mxu0
    %409 = vmatprep.mubr.f32.mxu0 0.0
    %410 = vmatmul.mubr.f32.gmra.mrb[0].mxu0 %v332
    %v411 = vpop.f32.mrb[0].mxu0
    %v412 = vadd.f32 0.0, %v411
    %v413 = vpop.f32.mrb[0].mxu0
    %414 = vmatprep.mubr.f32.mxu0 0.0
    %415 = vmatmul.mubr.f32.gmra.mrb[0].mxu0 %v335
    %v416 = vpop.f32.mrb[0].mxu0
    %v417 = vadd.f32 0.0, %v416
    %v418 = vpop.f32.mrb[0].mxu0
    %419 = vmatprep.mubr.f32.mxu0 0.0
    %420 = vmatmul.mubr.f32.gmra.mrb[0].mxu0 %v338
    %v421 = vpop.f32.mrb[0].mxu0
    %v422 = vadd.f32 0.0, %v421
    %v423 = vpop.f32.mrb[0].mxu0
    %424 = vdwg.mxu0
    %v425 = vadd.f32 %v308, %v407
    %v426 = vadd.f32 %v313, %v412
    %v427 = vadd.f32 %v318, %v417
    %v428 = vadd.f32 %v323, %v422
    %v429 = vld [vmem:[%s2] sm:$0x1]
    %v431 = vlaneseq
    %v432 = vshrl.u32 %v431, 7
    %v433 = vsub.s32 0, %v432
    %v434 = vrot.slane %v429, %v433
    %v436 = vadd.f32 %v425, %v434
    %v437 = vadd.f32 %v426, %v434
    %v438 = vadd.f32 %v427, %v434
    %v439 = vadd.f32 %v428, %v434
    %v440 = vmax.f32 %v436, 0.0
    %v441 = vmax.f32 %v437, 0.0
    %v442 = vmax.f32 %v438, 0.0
    %v443 = vmax.f32 %v439, 0.0
    %vm444 = vcmask 261120
    %v445 = vsel %vm444, %v440, 0.0
    %v446 = vsel %vm444, %v441, 0.0
    %v447 = vadd.f32 %v445, %v446
    %v448 = vrot.slane %v447, 4
    %v449 = vadd.f32 %v447, %v448
    %v450 = vrot.slane %v449, 2
    %v451 = vadd.f32 %v449, %v450
    %v452 = vrot.slane %v451, 1
    %v453 = vadd.f32 %v451, %v452
    %v454 = vsel %vm444, %v442, 0.0
    %v455 = vsel %vm444, %v443, 0.0
    %v456 = vadd.f32 %v454, %v455
    %v457 = vrot.slane %v456, 4
    %v458 = vadd.f32 %v456, %v457
    %v459 = vrot.slane %v458, 2
    %v460 = vadd.f32 %v458, %v459
    %v461 = vrot.slane %v460, 1
    %v462 = vadd.f32 %v460, %v461
    %v463 = vld [vmem:[%s3] sm:$0xff]
    %v464 = vld [vmem:[%s3 + $0x8] sm:$0xff]
    %v465 = vld [vmem:[%s3 + $0x10] sm:$0xff]
    %v466 = vld [vmem:[%s3 + $0x18] sm:$0xff]
    %v467 = vld [vmem:[%s4] sm:$0x1]
    %v469 = vlaneseq
    %v470 = vshrl.u32 %v469, 7
    %v471 = vsub.s32 0, %v470
    %v472 = vrot.slane %v467, %v471
    %vm476 = vcmask 1041409
    %v477 = vsel %vm476, %v462, %v453
    %v478 = vsel %vm444, %v477, 0
    %480 = vmatprep.subr.mxu0 0.0
    %481 = vmatpush1.msra.mxu0 %v463
    %482 = vmatprep.subr.mxu0 0.0
    %483 = vmatpush1.msra.mxu0 %v464
    %484 = vmatprep.subr.mxu0 0.0
    %485 = vmatpush1.msra.mxu0 %v465
    %486 = vmatprep.subr.mxu0 0.0
    %487 = vmatpush1.msra.mxu0 %v466
    %488 = vmatprep.subr.mxu0 0.0
    %489 = vmatpush1.msra.mxu0 0.0
    %490 = vmatprep.subr.mxu0 0.0
    %491 = vmatpush1.msra.mxu0 0.0
    %492 = vmatprep.subr.mxu0 0.0
    %493 = vmatpush1.msra.mxu0 0.0
    %494 = vmatprep.subr.mxu0 0.0
    %495 = vmatpush1.msra.mxu0 0.0
    %496 = vmatprep.subr.mxu0 0.0
    %497 = vmatpush1.msra.mxu0 0.0
    %498 = vmatprep.subr.mxu0 0.0
    %499 = vmatpush1.msra.mxu0 0.0
    %500 = vmatprep.subr.mxu0 0.0
    %501 = vmatpush1.msra.mxu0 0.0
    %502 = vmatprep.subr.mxu0 0.0
    %503 = vmatpush1.msra.mxu0 0.0
    %504 = vmatprep.subr.mxu0 0.0
    %505 = vmatpush1.msra.mxu0 0.0
    %506 = vmatprep.subr.mxu0 0.0
    %507 = vmatpush1.msra.mxu0 0.0
    %508 = vmatprep.subr.mxu0 0.0
    %509 = vmatpush1.msra.mxu0 0.0
    %510 = vmatprep.subr.mxu0 0.0
    %511 = vmatpush1.msra.mxu0 0.0
    %512 = vmatprep.subr.mxu0 0.0
    %513 = vmatpush1.msra.mxu0 0.0
    %514 = vmatprep.subr.mxu0 0.0
    %515 = vmatpush1.msra.mxu0 0.0
    %516 = vmatprep.subr.mxu0 0.0
    %517 = vmatpush1.msra.mxu0 0.0
    %518 = vmatprep.subr.mxu0 0.0
    %519 = vmatpush1.msra.mxu0 0.0
    %520 = vmatprep.subr.mxu0 0.0
    %521 = vmatpush1.msra.mxu0 0.0
    %522 = vmatprep.subr.mxu0 0.0
    %523 = vmatpush1.msra.mxu0 0.0
    %524 = vmatprep.subr.mxu0 0.0
    %525 = vmatpush1.msra.mxu0 0.0
    %526 = vmatprep.subr.mxu0 0.0
    %527 = vmatpush1.msra.mxu0 0.0
    %528 = vmatprep.subr.mxu0 0.0
    %529 = vmatpush1.msra.mxu0 0.0
    %530 = vmatprep.subr.mxu0 0.0
    %531 = vmatpush1.msra.mxu0 0.0
    %532 = vmatprep.subr.mxu0 0.0
    %533 = vmatpush1.msra.mxu0 0.0
    %534 = vmatprep.subr.mxu0 0.0
    %535 = vmatpush1.msra.mxu0 0.0
    %536 = vmatprep.subr.mxu0 0.0
    %537 = vmatpush1.msra.mxu0 0.0
    %538 = vmatprep.subr.mxu0 0.0
    %539 = vmatpush1.msra.mxu0 0.0
    %540 = vmatprep.subr.mxu0 0.0
    %541 = vmatpush1.msra.mxu0 0.0
    %542 = vmatprep.subr.mxu0 0.0
    %543 = vmatpush1.msra.mxu0 0.0
    %544 = vmatprep.mubr.f32.mxu0 0.0
    %545 = vmatmul.mubr.f32.gmra.mrb[0].mxu0 %v478
    %v546 = vpop.f32.mrb[0].mxu0
    %v547 = vadd.f32 %v472, %v546
    %v548 = vpop.f32.mrb[0].mxu0
    %549 = vdwg.mxu0
    %vm550 = vcmask 74752
    %551 = vst.msk [vmem:[#allocation2] sm:$0x3] %vm550, %v547
    // Predicated region
    $region22: #{single_cnn_forward.1} parent=1 // pred_check
      _
    $region23: #{single_cnn_forward.1} parent=1 // pred_check_branch
      %553 = sbr.rel (0) target = $region25
    $region24: #{single_cnn_forward.1} parent=1 // pred_region
      %s555 = ssub.s32 32, 32
      %556 = vsyncadd [#allocation3], %s555
      %s558 = sshll.u32 [#allocation2], 4
      %s559 = int_to_ptr.vmem [resolvable:$true] %s558
      %561 = dma.vmem_to_hbm [thread:$0]  %s559, 32, %s5, [#allocation3]
    $region25: #{single_cnn_forward.1} parent=1 // pred_fallthru
      _
    // Predicated region
    $region26: #{single_cnn_forward.1} parent=1 // pred_check
      _
    $region27: #{single_cnn_forward.1} parent=1 // pred_check_branch
      %563 = sbr.rel (0) target = $region29
    $region28: #{single_cnn_forward.1} parent=1 // pred_region
      %564 = dma.done [#allocation3], 32
    $region29: #{single_cnn_forward.1} parent=1 // pred_fallthru
      _
    %565 = vsyncpa [#allocation3], 1

</llo_original>
